<compile_context>
chip_gen: v6e
topology: v6e:2x2x1
jax: 0.10.0
libtpu: 0.0.40
codegen_flags: <defaults>
</compile_context>

<pallas_src>
import math
from functools import partial

import jax
import jax.numpy as jnp
from jax.experimental import pallas as pl
from jax.experimental.pallas import tpu as pltpu

_LANE = 128                     # TPU lane width (last vreg dim)
_SUBLANE_F32 = 8                # sublanes per vreg for 32-bit dtypes
_MIN_BLOCKS = 8                 # >= 2 TCs (v7x) x pipeline depth x 2
_MIN_BLOCK_BYTES = 512 << 10    # don't shrink blocks below this for the split
_MIN_PALLAS_BYTES = 256 << 10   # below this, metadata-only reshape always wins


def _copy_kernel(x_ref, o_ref):
    # Pure identity copy of one (TB, 128) tile: full-vreg loads/stores.
    o_ref[...] = x_ref[...]


def _target_block_bytes():
    """Per-array block size, tuned per TPU generation (safe default 4 MiB)."""
    try:
        kind = jax.devices()[0].device_kind.lower()
    except Exception:
        return 4 << 20
    if "v7" in kind:
        return 8 << 20          # 3.2 TB/s HBM: bigger DMAs amortize step overhead
    if "v5 lite" in kind or "v5e" in kind:
        return 2 << 20          # stay well inside v5e's small scoped-VMEM budget
    return 4 << 20              # v6e / default


def _block_rows(rows, itemsize, block_bytes):
    """Rows per block: dtype-aware sublane multiple, ~block_bytes per block,
    and at least _MIN_BLOCKS blocks when the array is big enough (v7x megacore)."""
    smult = max(_SUBLANE_F32, 32 // itemsize)   # 8 f32 / 16 bf16 / 32 int8
    if rows <= smult:
        return rows                             # block == full array dim (allowed)

    def rnd(r):                                 # round down to smult, floor smult
        return max(smult, (r // smult) * smult)

    cap = rnd(block_bytes // (_LANE * itemsize))            # ~block_bytes rows
    floor_rows = rnd(_MIN_BLOCK_BYTES // (_LANE * itemsize))  # keep blocks big
    split = rnd(pl.cdiv(rows, _MIN_BLOCKS))                  # >= _MIN_BLOCKS blocks
    tb = min(cap, max(split, floor_rows))
    return min(tb, rows)


def _pallas_copy_reshape(x, target_shape, alias):
    total = math.prod(x.shape)
    itemsize = jnp.dtype(x.dtype).itemsize
    rows = total // _LANE                  # caller guarantees total % 128 == 0
    x2d = x.reshape(rows, _LANE)           # lane-dense slab, metadata-only

    tb = _block_rows(rows, itemsize, _target_block_bytes())
    num_blocks = pl.cdiv(rows, tb)

    # 2 arrays x 2 pipeline buffers x one block, plus headroom for internal
    # scratch.  Stays far under physical VMEM on every generation (v7x 64 MiB).
    block_bytes = tb * _LANE * itemsize
    vmem_limit = int(min(2 * 2 * block_bytes + (8 << 20), 48 << 20))

    extra = {"input_output_aliases": {0: 0}} if alias else {}

    out2d = pl.pallas_call(
        _copy_kernel,
        out_shape=jax.ShapeDtypeStruct((rows, _LANE), x.dtype),
        grid_spec=pltpu.PrefetchScalarGridSpec(
            num_scalar_prefetch=0,
            grid=(num_blocks,),
            in_specs=[pl.BlockSpec((tb, _LANE), lambda i: (i, 0))],
            out_specs=pl.BlockSpec((tb, _LANE), lambda i: (i, 0)),
        ),
        compiler_params=pltpu.CompilerParams(
            dimension_semantics=("parallel",),   # v7x: both TCs split the blocks
            vmem_limit_bytes=vmem_limit,
        ),
        # Pure memory op: one read + one write of the tensor.
        cost_estimate=pl.CostEstimate(
            flops=0, transcendentals=0, bytes_accessed=2 * total * itemsize),
        **extra,
    )(x2d)

    # Final target-shape application is metadata-only glue (matches x.view()).
    return out2d.reshape(target_shape)


@partial(jax.jit, static_argnames=("target_shape",))
def _view_pallas(x, target_shape):
    return _pallas_copy_reshape(x, target_shape, alias=False)


@partial(jax.jit, static_argnames=("target_shape",), donate_argnums=(0,))
def _view_pallas_donated(x, target_shape):
    return _pallas_copy_reshape(x, target_shape, alias=True)


def _resolve_target_shape(x, shape):
    """Resolve View(*shape): keep batch dim, support one -1, validate sizes."""
    b = x.shape[0]
    n = math.prod(x.shape[1:])
    shape = tuple(int(s) for s in shape)
    neg = [i for i, s in enumerate(shape) if s == -1]
    if len(neg) > 1:
        raise ValueError("View: only one dimension may be -1")
    if neg:
        known = math.prod(s for s in shape if s != -1)
        if known == 0 or n % known != 0:
            raise ValueError(f"View{shape} incompatible with per-example size {n}")
        shape = shape[:neg[0]] + (n // known,) + shape[neg[0] + 1:]
    if math.prod(shape) != n:
        raise ValueError(f"View{shape} incompatible with per-example size {n}")
    return (b,) + shape


def view_forward(x, *shape, donate=False, min_pallas_bytes=_MIN_PALLAS_BYTES):
    """Equivalent of View(*shape).forward(x): reshape to (batch, *shape)."""
    target = _resolve_target_shape(x, shape)
    total = math.prod(x.shape)
    nbytes = total * jnp.dtype(x.dtype).itemsize
    # Small or lane-unaligned tensors: jnp.reshape is metadata-only and strictly
    # cheaper than any copy kernel (also avoids any pad/slice extra HBM passes).
    if total == 0 or nbytes < min_pallas_bytes or total % _LANE != 0:
        return jnp.reshape(x, target)
    impl = _view_pallas_donated if donate else _view_pallas
    return impl(x, target)


class View:
    """Tiny functional analogue of the PyTorch module."""

    def __init__(self, *shape):
        self.shape = tuple(int(s) for s in shape)

    def __call__(self, x, *, donate=False):
        return view_forward(x, *self.shape, donate=donate)


if __name__ == "__main__":
    key = jax.random.PRNGKey(0)
    B, C, H, W = 2, 4, 16, 16
    x = jax.random.normal(key, (B, C, H, W), dtype=jnp.float32)

    # 1) Small tensor: fast metadata-only path.  View(C*H*W) flattens per-example.
    out = jax.block_until_ready(view_forward(x, C * H * W))
    assert out.shape == (B, C * H * W) and out.dtype == x.dtype
    assert bool(jnp.array_equal(out, x.reshape(B, -1)))

    # Multi-dim target plus an inferred -1 dimension, View(16, -1).
    out2 = jax.block_until_ready(view_forward(x, 16, -1))
    assert out2.shape == (B, 16, 64)
    assert bool(jnp.array_equal(out2, x.reshape(B, 16, 64)))

    # 2) Force the Pallas copy path at the same small shape (coverage).
    out3 = jax.block_until_ready(view_forward(x, -1, min_pallas_bytes=0))
    assert out3.shape == (B, C * H * W)
    assert bool(jnp.array_equal(out3, x.reshape(B, -1)))

    # 3) Larger tensor (768 KiB): multi-block grid with a partial trailing block.
    x_big = jax.random.normal(jax.random.PRNGKey(0), (2, 6, 128, 128), jnp.float32)
    out_big = jax.block_until_ready(view_forward(x_big, -1))
    assert out_big.shape == (2, 6 * 128 * 128)
    assert bool(jnp.array_equal(out_big, x_big.reshape(2, -1)))

    # 4) Donated-input variant (alias {0:0}); x_don must not be reused after.
    x_don = x_big + 0.0
    out_don = jax.block_until_ready(view_forward(x_don, 6, 128, 128, donate=True))
    assert out_don.shape == (2, 6, 128, 128)
    assert bool(jnp.array_equal(out_don, x_big))

    # bf16 coverage (dtype-aware sublane rounding: 16-row quantum).
    x_bf = x_big.astype(jnp.bfloat16)
    out_bf = jax.block_until_ready(view_forward(x_bf, -1, min_pallas_bytes=0))
    assert out_bf.dtype == jnp.bfloat16
    assert bool(jnp.array_equal(out_bf, x_bf.reshape(2, -1)))

    print("KERNEL_OK")
</pallas_src>

<mosaic_0001>
module attributes {stable_mosaic.version = 11 : i64} {
  func.func @_copy_kernel(%arg0: i32, %arg1: memref<16x128xf32, #tpu.memory_space<vmem>>, %arg2: memref<16x128xf32, #tpu.memory_space<vmem>>) attributes {dimension_semantics = [#tpu.dimension_semantics<parallel>], iteration_bounds = array<i64: 1>, scalar_prefetch = 0 : i64, scratch_operands = 0 : i64, tpu.core_type = #tpu.core_type<tc>, window_params = [{transform_indices = @transform_0, window_bounds = array<i64: 16, 128>}, {transform_indices = @transform_1, window_bounds = array<i64: 16, 128>}]} {
    %c0 = arith.constant 0 : index
    %c0_0 = arith.constant 0 : index
    %0 = vector.load %arg1[%c0, %c0_0] : memref<16x128xf32, #tpu.memory_space<vmem>>, vector<16x128xf32>
    %c0_1 = arith.constant 0 : index
    %c0_2 = arith.constant 0 : index
    %1 = vector.load %arg2[%c0_1, %c0_2] : memref<16x128xf32, #tpu.memory_space<vmem>>, vector<16x128xf32>
    tpu.vector_store %arg2[%c0_1, %c0_2], %0 {strides = array<i32>} : memref<16x128xf32, #tpu.memory_space<vmem>>, vector<16x128xf32>,
    return
  }
  func.func @transform_0(%arg0: i32) -> (i32, i32) {
    %c0_i32 = arith.constant 0 : i32
    %c0_i32_0 = arith.constant 0 : i32
    return %arg0, %c0_i32 : i32, i32
  }
  func.func @transform_1(%arg0: i32) -> (i32, i32) {
    %c0_i32 = arith.constant 0 : i32
    %c0_i32_0 = arith.constant 0 : i32
    return %arg0, %c0_i32 : i32, i32
  }
}

</mosaic_0001>

<llo_original>
// kernel: _view_pallas.1
$region0: #{_view_pallas.1}
  #allocation0 [shape = 'u32[]', space=smem, size = 0x4, offset = 0x4, fixed_abs, tag = 'smem constant byte address 0x4 - core index']
  #allocation1 [shape = 'u32[144,128]{1,0:T(1,128)}', space=vmem, size = 0x12000, scoped, tag = 'internal scratch']
  %s0 = inlined_call_operand.vmem [shape: f32[16,128], index: 0, kind: input, shape index: {}]
  %s1 = inlined_call_operand.vmem [shape: f32[16,128], index: 1, kind: output, shape index: {}]
  %s2 = sld [smem:[#allocation0]]
  $region14: #{_view_pallas.1} parent=0
    _
  %s4 = ssub.s32 1, %s2
  %s5 = scalar_select 0, %s4, %s2
  // Predicated region
  $region2: #{_view_pallas.1} parent=0 // pred_check
    _
  $region3: #{_view_pallas.1} parent=0 // pred_check_branch
    %7 = sbr.rel (0) target = $region5
  $region4: #{_view_pallas.1} parent=0 // pred_region
    _
  $region5: #{_view_pallas.1} parent=0 // pred_fallthru
    _
  %v8 = vld [vmem:[%s0] sm:$0xff]
  %v9 = vld [vmem:[%s0 + $0x8] sm:$0xff]
  %10 = vst [vmem:[%s1] sm:$0xff] %v8
  %11 = vst [vmem:[%s1 + $0x8] sm:$0xff] %v9
  // Predicated region
  $region6: #{_view_pallas.1} parent=0 // pred_check
    _
  $region7: #{_view_pallas.1} parent=0 // pred_check_branch
    %13 = sbr.rel (0) target = $region9
  $region8: #{_view_pallas.1} parent=0 // pred_region
    _
  $region9: #{_view_pallas.1} parent=0 // pred_fallthru
    _
  // Predicated region
  $region10: #{_view_pallas.1} parent=0 // pred_check
    _
  $region11: #{_view_pallas.1} parent=0 // pred_check_branch
    %15 = sbr.rel (0) target = $region13
  $region12: #{_view_pallas.1} parent=0 // pred_region
    _
  $region13: #{_view_pallas.1} parent=0 // pred_fallthru
    _

</llo_original>
